<compile_context>
chip_gen: v7x
topology: tpu7x:2x2x1
jax: 0.10.0
libtpu: 0.0.40
codegen_flags: <defaults>
</compile_context>

<pallas_src>
import functools

import jax
import jax.numpy as jnp
from jax import lax
from jax.experimental import pallas as pl
from jax.experimental.pallas import tpu as pltpu

LANE = 128


def _round_up(n, m):
    return ((n + m - 1) // m) * m


def _cdiv(a, b):
    return -(-a // b)


def mlp_kernel(x_ref, w1_ref, w2_ref, b2_ref, o_ref, *, bf16_matmul):
    # x_ref:  (TB, IN)      f32 batch tile (pipelined)
    # w1_ref: (IN+1, H)     f32 first-layer weights; last row is the bias (resident)
    # w2_ref: (H, C_pad)    f32 second-layer weights, lane-padded for the MXU (resident)
    # b2_ref: (1, C)        f32 second-layer bias, unpadded (resident)
    # o_ref:  (TB, C)       f32 output tile — narrow, so HBM writeback is only C*4 B/row
    x = x_ref[...]
    w1 = w1_ref[...]
    n_in = w1_ref.shape[0] - 1
    C = o_ref.shape[1]

    # First layer on the VPU: K = n_in (=2) broadcast FMAs; the bias row seeds the sum.
    h = w1[n_in:n_in + 1, :]                      # (1, H), broadcasts over rows
    for j in range(n_in):                         # static, unrolled
        h = h + x[:, j:j + 1] * w1[j:j + 1, :]    # (TB,1)*(1,H) -> (TB,H)
    h = jnp.maximum(h, 0.0)                       # ReLU

    # Second layer on the MXU.
    if bf16_matmul:
        # Single-pass bf16 — use on v5e when bit-level f32 fidelity is not required.
        y = jnp.dot(h.astype(jnp.bfloat16), w2_ref[...].astype(jnp.bfloat16),
                    preferred_element_type=jnp.float32)
    else:
        # f32-faithful path (matches PyTorch f32 to ~1e-6).
        y = jnp.dot(h, w2_ref[...], preferred_element_type=jnp.float32,
                    precision=lax.Precision.HIGHEST)

    # Slice back to the true feature width before the bias add / store so the
    # HBM output stays narrow (C, not 128).
    o_ref[...] = (y[:, :C] + b2_ref[...]).astype(o_ref.dtype)


def pack_params(w1, b1, w2, b2):
    """One-time packing (hoisted out of the forward hot path).

    w1: (IN, H), b1: (1, H), w2: (H, C), b2: (1, C)  [transposed vs PyTorch (OUT, IN)]
    Returns (w1_aug, w2_pad, b2) where b1 is folded into w1 as an extra row and
    w2 is zero-padded to a 128-lane width for the MXU.
    """
    IN, H = w1.shape
    H2, C = w2.shape
    assert H == H2
    c_pad = _round_up(C, LANE)
    w1_aug = jnp.concatenate([w1, b1.reshape(1, H)], axis=0)        # (IN+1, H)
    w2_pad = jnp.zeros((H, c_pad), w2.dtype).at[:, :C].set(w2)      # (H, C_pad)
    return w1_aug, w2_pad, b2.reshape(1, C)


def _tile_plan(B, tb_max):
    """Balanced 8-aligned batch tiles; >=2 tiles for large B (v7x megacore)."""
    n_tiles = _cdiv(B, tb_max)
    if B >= 4096:
        n_tiles = max(n_tiles, 2)   # keep both v7x TensorCores busy on the parallel axis
    TB = _round_up(_cdiv(B, n_tiles), 8)
    return n_tiles, TB, n_tiles * TB


def linear_with_activation(x, w1_aug, w2_pad, b2, *, tb_max=8192, bf16_matmul=False):
    """y = relu(x @ w1 + b1) @ w2 + b2.  Params must come from pack_params()."""
    B, IN = x.shape
    H = w1_aug.shape[1]
    c_pad = w2_pad.shape[1]
    C = b2.shape[1]

    n_tiles, TB, B_pad = _tile_plan(B, tb_max)

    x_in = x
    if B_pad != B:
        x_in = jnp.zeros((B_pad, IN), x.dtype).at[:B, :].set(x)

    out = pl.pallas_call(
        functools.partial(mlp_kernel, bf16_matmul=bf16_matmul),
        out_shape=jax.ShapeDtypeStruct((B_pad, C), jnp.float32),
        grid=(n_tiles,),
        in_specs=[
            pl.BlockSpec((TB, IN), lambda i: (i, 0)),        # pipelined batch tile
            pl.BlockSpec((IN + 1, H), lambda i: (0, 0)),     # resident w1 (+ b1 row)
            pl.BlockSpec((H, c_pad), lambda i: (0, 0)),      # resident w2 (lane-padded)
            pl.BlockSpec((1, C), lambda i: (0, 0)),          # resident b2
        ],
        out_specs=pl.BlockSpec((TB, C), lambda i: (i, 0)),   # narrow output, no HBM padding
        compiler_params=pltpu.CompilerParams(
            dimension_semantics=("parallel",),
            vmem_limit_bytes=48 * 1024 * 1024,               # headroom for TB=8192 tiles
        ),
    )(x_in, w1_aug, w2_pad, b2)

    return out[:B, :] if B_pad != B else out


def init_params(key, in_features=2, hidden=64, num_output_classes=10):
    """Deterministic init mimicking nn.Linear default U(-1/sqrt(in), 1/sqrt(in))."""
    k1, k2, k3, k4 = jax.random.split(key, 4)
    bound1 = 1.0 / jnp.sqrt(in_features)
    bound2 = 1.0 / jnp.sqrt(hidden)
    # Stored as (IN, OUT) — transpose of PyTorch's (OUT, IN) weight layout.
    w1 = jax.random.uniform(k1, (in_features, hidden), jnp.float32, -bound1, bound1)
    b1 = jax.random.uniform(k2, (1, hidden), jnp.float32, -bound1, bound1)
    w2 = jax.random.uniform(k3, (hidden, num_output_classes), jnp.float32, -bound2, bound2)
    b2 = jax.random.uniform(k4, (1, num_output_classes), jnp.float32, -bound2, bound2)
    return w1, b1, w2, b2


if __name__ == "__main__":
    key = jax.random.PRNGKey(0)
    kx1, kx2, kx3, kp = jax.random.split(key, 4)

    IN, H, C = 2, 64, 10
    w1, b1, w2, b2 = init_params(kp, IN, H, C)
    packed = pack_params(w1, b1, w2, b2)   # one-time packing, out of the hot path

    def ref_fwd(xv):
        hv = jnp.maximum(
            jnp.dot(xv, w1, precision=lax.Precision.HIGHEST) + b1, 0.0)
        return jnp.dot(hv, w2, precision=lax.Precision.HIGHEST) + b2

    # Small batch, same as the original module's usage.
    x = jax.random.normal(kx1, (8, IN), jnp.float32)
    out = jax.block_until_ready(linear_with_activation(x, *packed))
    assert out.shape == (8, C)
    assert jnp.allclose(out, ref_fwd(x), atol=1e-5, rtol=1e-5)

    # Non-multiple-of-8 batch exercises the row-padding / slicing path.
    x_odd = jax.random.normal(kx2, (13, IN), jnp.float32)
    out_odd = jax.block_until_ready(linear_with_activation(x_odd, *packed))
    assert out_odd.shape == (13, C)
    assert jnp.allclose(out_odd, ref_fwd(x_odd), atol=1e-5, rtol=1e-5)

    # Multi-tile grid + balanced tiling path (small tb_max keeps shapes small).
    x_big = jax.random.normal(kx3, (1037, IN), jnp.float32)
    out_big = jax.block_until_ready(
        linear_with_activation(x_big, *packed, tb_max=512))
    assert out_big.shape == (1037, C)
    assert jnp.allclose(out_big, ref_fwd(x_big), atol=1e-5, rtol=1e-5)

    print("KERNEL_OK")
</pallas_src>

<mosaic_0001>
module attributes {stable_mosaic.version = 11 : i64} {
  func.func @mlp_kernel(%arg0: i32, %arg1: memref<8x2xf32, #tpu.memory_space<vmem>>, %arg2: memref<3x64xf32, #tpu.memory_space<vmem>>, %arg3: memref<64x128xf32, #tpu.memory_space<vmem>>, %arg4: memref<1x10xf32, #tpu.memory_space<vmem>>, %arg5: memref<8x10xf32, #tpu.memory_space<vmem>>) attributes {dimension_semantics = [#tpu.dimension_semantics<parallel>], iteration_bounds = array<i64: 1>, scalar_prefetch = 0 : i64, scratch_operands = 0 : i64, tpu.core_type = #tpu.core_type<tc>, window_params = [{transform_indices = @transform_0, window_bounds = array<i64: 8, 2>}, {pipeline_mode = #tpu.pipeline_mode<synchronous>, transform_indices = @transform_1, window_bounds = array<i64: 3, 64>}, {pipeline_mode = #tpu.pipeline_mode<synchronous>, transform_indices = @transform_2, window_bounds = array<i64: 64, 128>}, {pipeline_mode = #tpu.pipeline_mode<synchronous>, transform_indices = @transform_3, window_bounds = array<i64: 1, 10>}, {transform_indices = @transform_4, window_bounds = array<i64: 8, 10>}]} {
    %c0 = arith.constant 0 : index
    %c0_0 = arith.constant 0 : index
    %0 = vector.load %arg1[%c0, %c0_0] : memref<8x2xf32, #tpu.memory_space<vmem>>, vector<8x2xf32>
    %c0_1 = arith.constant 0 : index
    %c0_2 = arith.constant 0 : index
    %1 = vector.load %arg2[%c0_1, %c0_2] : memref<3x64xf32, #tpu.memory_space<vmem>>, vector<3x64xf32>
    %2 = vector.extract_strided_slice %1 {offsets = [2, 0], sizes = [1, 64], strides = [1, 1]} : vector<3x64xf32> to vector<1x64xf32>
    %3 = vector.extract_strided_slice %0 {offsets = [0, 0], sizes = [8, 1], strides = [1, 1]} : vector<8x2xf32> to vector<8x1xf32>
    %4 = vector.extract_strided_slice %1 {offsets = [0, 0], sizes = [1, 64], strides = [1, 1]} : vector<3x64xf32> to vector<1x64xf32>
    %5 = vector.broadcast %3 : vector<8x1xf32> to vector<8x64xf32>
    %6 = vector.broadcast %4 : vector<1x64xf32> to vector<8x64xf32>
    %7 = arith.mulf %5, %6 : vector<8x64xf32>
    %8 = vector.broadcast %2 : vector<1x64xf32> to vector<8x64xf32>
    %9 = arith.addf %8, %7 : vector<8x64xf32>
    %10 = vector.extract_strided_slice %0 {offsets = [0, 1], sizes = [8, 1], strides = [1, 1]} : vector<8x2xf32> to vector<8x1xf32>
    %11 = vector.extract_strided_slice %1 {offsets = [1, 0], sizes = [1, 64], strides = [1, 1]} : vector<3x64xf32> to vector<1x64xf32>
    %12 = vector.broadcast %10 : vector<8x1xf32> to vector<8x64xf32>
    %13 = vector.broadcast %11 : vector<1x64xf32> to vector<8x64xf32>
    %14 = arith.mulf %12, %13 : vector<8x64xf32>
    %15 = arith.addf %9, %14 : vector<8x64xf32>
    %cst = arith.constant 0.000000e+00 : f32
    %16 = vector.broadcast %cst : f32 to vector<8x64xf32>
    %17 = arith.maximumf %15, %16 : vector<8x64xf32>
    %c0_3 = arith.constant 0 : index
    %c0_4 = arith.constant 0 : index
    %18 = vector.load %arg3[%c0_3, %c0_4] : memref<64x128xf32, #tpu.memory_space<vmem>>, vector<64x128xf32>
    %cst_5 = arith.constant dense<0.000000e+00> : vector<8x128xf32>
    %19 = tpu.matmul %17, %18, %cst_5 {dimension_numbers = #tpu.dot_dimension_numbers<[1], [0], [0], [1], [0, 0, 1, 1], [], []>, precision = #tpu.contract_precision<fp32>} : vector<8x64xf32>, vector<64x128xf32>, vector<8x128xf32> -> vector<8x128xf32>
    %20 = vector.extract_strided_slice %19 {offsets = [0, 0], sizes = [8, 10], strides = [1, 1]} : vector<8x128xf32> to vector<8x10xf32>
    %c0_6 = arith.constant 0 : index
    %c0_7 = arith.constant 0 : index
    %21 = vector.load %arg4[%c0_6, %c0_7] : memref<1x10xf32, #tpu.memory_space<vmem>>, vector<1x10xf32>
    %22 = vector.broadcast %21 : vector<1x10xf32> to vector<8x10xf32>
    %23 = arith.addf %20, %22 : vector<8x10xf32>
    %c0_8 = arith.constant 0 : index
    %c0_9 = arith.constant 0 : index
    %24 = vector.load %arg5[%c0_8, %c0_9] : memref<8x10xf32, #tpu.memory_space<vmem>>, vector<8x10xf32>
    tpu.vector_store %arg5[%c0_8, %c0_9], %23 {strides = array<i32>} : memref<8x10xf32, #tpu.memory_space<vmem>>, vector<8x10xf32>,
    return
  }
  func.func @transform_0(%arg0: i32) -> (i32, i32) {
    %c0_i32 = arith.constant 0 : i32
    %c0_i32_0 = arith.constant 0 : i32
    return %arg0, %c0_i32 : i32, i32
  }
  func.func @transform_1(%arg0: i32) -> (i32, i32) {
    %c0_i32 = arith.constant 0 : i32
    %c0_i32_0 = arith.constant 0 : i32
    %c0_i32_1 = arith.constant 0 : i32
    return %c0_i32, %c0_i32_0 : i32, i32
  }
  func.func @transform_2(%arg0: i32) -> (i32, i32) {
    %c0_i32 = arith.constant 0 : i32
    %c0_i32_0 = arith.constant 0 : i32
    %c0_i32_1 = arith.constant 0 : i32
    return %c0_i32, %c0_i32_0 : i32, i32
  }
  func.func @transform_3(%arg0: i32) -> (i32, i32) {
    %c0_i32 = arith.constant 0 : i32
    %c0_i32_0 = arith.constant 0 : i32
    %c0_i32_1 = arith.constant 0 : i32
    return %c0_i32, %c0_i32_0 : i32, i32
  }
  func.func @transform_4(%arg0: i32) -> (i32, i32) {
    %c0_i32 = arith.constant 0 : i32
    %c0_i32_0 = arith.constant 0 : i32
    return %arg0, %c0_i32 : i32, i32
  }
}

</mosaic_0001>

<llo_original>
// kernel: tpu_custom_call.1
$region0: #{tpu_custom_call.1}
  #allocation0 [shape = 'u32[]', space=smem, size = 0x4, offset = 0x4, fixed_abs, tag = 'smem constant byte address 0x4 - core index']
  #allocation1 [shape = 'u32[144,128]{1,0:T(1,128)}', space=vmem, size = 0x12000, scoped, tag = 'internal scratch']
  %s0 = inlined_call_operand.vmem [shape: f32[8,2], index: 0, kind: input, shape index: {}]
  %s1 = inlined_call_operand.vmem [shape: f32[3,64], index: 1, kind: input, shape index: {}]
  %s2 = inlined_call_operand.hbm [shape: f32[64,128], index: 2, kind: input, shape index: {}]
  %s3 = inlined_call_operand.vmem [shape: f32[1,10], index: 3, kind: input, shape index: {}]
  %s4 = inlined_call_operand.hbm [shape: f32[8,10], index: 4, kind: output, shape index: {}]
  %s5 = sld [smem:[#allocation0]]
  $region30: #{tpu_custom_call.1} parent=0
    _
  %s7 = ssub.s32 1, %s5
  %s8 = scalar_select 0, %s7, %s5
  $region1: #{tpu_custom_call.1} parent=0
    #allocation2 [shape = 'u8[32768]{0}', space=vmem, size = 0x8000, scoped, tag = 'input window, operand 2, single buffered']
    #allocation3 [shape = 's32[1]{0}', space=sflag, size = 0x4, scoped, tag = 'scoped memory for tpu_custom_call.1']
    #allocation4 [shape = 's32[1]{0}', space=sflag, size = 0x4, scoped, tag = 'scoped memory for tpu_custom_call.1']
    #allocation5 [shape = 'u8[4096]{0}', space=vmem, size = 0x1000, scoped, tag = 'output window, operand 0, single buffered']
    %9 = vsyncpa [#allocation3], 0
    %10 = vsyncpa [#allocation4], 0
    // Predicated region
    $region2: #{tpu_custom_call.1} parent=1 // pred_check
      _
    $region3: #{tpu_custom_call.1} parent=1 // pred_check_branch
      %12 = sbr.rel (0) target = $region5
    $region4: #{tpu_custom_call.1} parent=1 // pred_region
      _
    $region5: #{tpu_custom_call.1} parent=1 // pred_fallthru
      _
    // Predicated region
    $region6: #{tpu_custom_call.1} parent=1 // pred_check
      _
    $region7: #{tpu_custom_call.1} parent=1 // pred_check_branch
      %14 = sbr.rel (0) target = $region9
    $region8: #{tpu_custom_call.1} parent=1 // pred_region
      _
    $region9: #{tpu_custom_call.1} parent=1 // pred_fallthru
      _
    // Predicated region
    $region10: #{tpu_custom_call.1} parent=1 // pred_check
      _
    $region11: #{tpu_custom_call.1} parent=1 // pred_check_branch
      %16 = sbr.rel (0) target = $region13
    $region12: #{tpu_custom_call.1} parent=1 // pred_region
      %s18 = ssub.s32 1024, 1024
      %19 = vsyncadd [#allocation3], %s18
      %s20 = sshll.u32 [#allocation2], 4
      %s21 = int_to_ptr.vmem [resolvable:$true] %s20
      %26 = dma.hbm_to_vmem [thread:$0]  %s2, 1024, %s21, [#allocation3], 128, 128, 8
    $region13: #{tpu_custom_call.1} parent=1 // pred_fallthru
      _
    // Predicated region
    $region14: #{tpu_custom_call.1} parent=1 // pred_check
      _
    $region15: #{tpu_custom_call.1} parent=1 // pred_check_branch
      %28 = sbr.rel (0) target = $region17
    $region16: #{tpu_custom_call.1} parent=1 // pred_region
      _
    $region17: #{tpu_custom_call.1} parent=1 // pred_fallthru
      _
    // Predicated region
    $region18: #{tpu_custom_call.1} parent=1 // pred_check
      _
    $region19: #{tpu_custom_call.1} parent=1 // pred_check_branch
      %30 = sbr.rel (0) target = $region21
    $region20: #{tpu_custom_call.1} parent=1 // pred_region
      %31 = dma.done [#allocation3], 1024
    $region21: #{tpu_custom_call.1} parent=1 // pred_fallthru
      _
    %v32 = vld [vmem:[%s0] sm:$0xff]
    %v33 = vld [vmem:[%s1] sm:$0x7]
    %35 = vset.pattern.permute.xlu0 0
    %36 = vperm.xlu0 %35, %v32
    %v37 = vpop.permute.xlu0 %36
    %v39 = vlaneseq
    %v40 = vshrl.u32 %v39, 7
    %v41 = vsub.s32 0, %v40
    %v42 = vrot.slane %v33, %v41
    %v43 = vmul.f32 %v37, %v42
    %v44 = vlaneseq
    %v45 = vshrl.u32 %v44, 7
    %v46 = vsub.s32 2, %v45
    %v47 = vrot.slane %v33, %v46
    %v48 = vadd.f32 %v47, %v43
    %49 = vset.pattern.permute.xlu0 1
    %50 = vperm.xlu0 %49, %v32
    %v51 = vpop.permute.xlu0 %50
    %v53 = vlaneseq
    %v54 = vshrl.u32 %v53, 7
    %v55 = vsub.s32 1, %v54
    %v56 = vrot.slane %v33, %v55
    %v57 = vmul.f32 %v51, %v56
    %v58 = vadd.f32 %v48, %v57
    %v59 = vmax.f32 %v58, 0.0
    %v60 = vld [vmem:[#allocation2] sm:$0xff]
    %v61 = vld [vmem:[#allocation2 + $0x8] sm:$0xff]
    %v62 = vld [vmem:[#allocation2 + $0x10] sm:$0xff]
    %v63 = vld [vmem:[#allocation2 + $0x18] sm:$0xff]
    %v64 = vld [vmem:[#allocation2 + $0x20] sm:$0xff]
    %v65 = vld [vmem:[#allocation2 + $0x28] sm:$0xff]
    %v66 = vld [vmem:[#allocation2 + $0x30] sm:$0xff]
    %v67 = vld [vmem:[#allocation2 + $0x38] sm:$0xff]
    %vm68 = vcmask 523264
    %v70 = vsel %vm68, %v59, 0
    %72 = vmatprep.subr.mxu0 0.0
    %v73 = vand.u32 %v60, 4294901760
    %74 = vmatpush1.msra.mxu0 %v73
    %75 = vmatprep.subr.mxu0 0.0
    %v76 = vand.u32 %v61, 4294901760
    %77 = vmatpush1.msra.mxu0 %v76
    %78 = vmatprep.subr.mxu0 0.0
    %v79 = vand.u32 %v62, 4294901760
    %80 = vmatpush1.msra.mxu0 %v79
    %81 = vmatprep.subr.mxu0 0.0
    %v82 = vand.u32 %v63, 4294901760
    %83 = vmatpush1.msra.mxu0 %v82
    %84 = vmatprep.subr.mxu0 0.0
    %v85 = vand.u32 %v64, 4294901760
    %86 = vmatpush1.msra.mxu0 %v85
    %87 = vmatprep.subr.mxu0 0.0
    %v88 = vand.u32 %v65, 4294901760
    %89 = vmatpush1.msra.mxu0 %v88
    %90 = vmatprep.subr.mxu0 0.0
    %v91 = vand.u32 %v66, 4294901760
    %92 = vmatpush1.msra.mxu0 %v91
    %93 = vmatprep.subr.mxu0 0.0
    %v94 = vand.u32 %v67, 4294901760
    %95 = vmatpush1.msra.mxu0 %v94
    %96 = vmatprep.subr.mxu0 0.0
    %97 = vmatpush1.msra.mxu0 0.0
    %98 = vmatprep.subr.mxu0 0.0
    %99 = vmatpush1.msra.mxu0 0.0
    %100 = vmatprep.subr.mxu0 0.0
    %101 = vmatpush1.msra.mxu0 0.0
    %102 = vmatprep.subr.mxu0 0.0
    %103 = vmatpush1.msra.mxu0 0.0
    %104 = vmatprep.subr.mxu0 0.0
    %105 = vmatpush1.msra.mxu0 0.0
    %106 = vmatprep.subr.mxu0 0.0
    %107 = vmatpush1.msra.mxu0 0.0
    %108 = vmatprep.subr.mxu0 0.0
    %109 = vmatpush1.msra.mxu0 0.0
    %110 = vmatprep.subr.mxu0 0.0
    %111 = vmatpush1.msra.mxu0 0.0
    %112 = vmatprep.subr.mxu0 0.0
    %113 = vmatpush1.msra.mxu0 0.0
    %114 = vmatprep.subr.mxu0 0.0
    %115 = vmatpush1.msra.mxu0 0.0
    %116 = vmatprep.subr.mxu0 0.0
    %117 = vmatpush1.msra.mxu0 0.0
    %118 = vmatprep.subr.mxu0 0.0
    %119 = vmatpush1.msra.mxu0 0.0
    %120 = vmatprep.subr.mxu0 0.0
    %121 = vmatpush1.msra.mxu0 0.0
    %122 = vmatprep.subr.mxu0 0.0
    %123 = vmatpush1.msra.mxu0 0.0
    %124 = vmatprep.subr.mxu0 0.0
    %125 = vmatpush1.msra.mxu0 0.0
    %126 = vmatprep.subr.mxu0 0.0
    %127 = vmatpush1.msra.mxu0 0.0
    %128 = vmatprep.subr.mxu0 0.0
    %129 = vmatpush1.msra.mxu0 0.0
    %130 = vmatprep.subr.mxu0 0.0
    %131 = vmatpush1.msra.mxu0 0.0
    %132 = vmatprep.subr.mxu0 0.0
    %133 = vmatpush1.msra.mxu0 0.0
    %134 = vmatprep.subr.mxu0 0.0
    %135 = vmatpush1.msra.mxu0 0.0
    %136 = vmatprep.subr.mxu0 0.0
    %137 = vmatpush1.msra.mxu0 0.0
    %138 = vmatprep.subr.mxu0 0.0
    %139 = vmatpush1.msra.mxu0 0.0
    %140 = vmatprep.subr.mxu0 0.0
    %141 = vmatpush1.msra.mxu0 0.0
    %142 = vmatprep.subr.mxu0 0.0
    %143 = vmatpush1.msra.mxu0 0.0
    %144 = vmatprep.mubr.f32.mxu0 0.0
    %v145 = vand.u32 %v70, 4294901760
    %v146 = vsub.f32 %v70, %v145
    %v147 = vand.u32 %v146, 4294901760
    %v148 = vsub.f32 %v146, %v147
    %v149 = vand.u32 %v148, 4294901760
    %150 = vmatmul.mubr.f32.gmra.mrb[0].mxu0 %v149
    %v151 = vpop.f32.mrb[0].mxu0
    %v152 = vadd.f32 0.0, %v151
    %v153 = vpop.f32.mrb[0].mxu0
    %154 = vdwg.mxu0
    %155 = vmatprep.subr.mxu0 0.0
    %v156 = vand.u32 %v60, 4294901760
    %v157 = vsub.f32 %v60, %v156
    %v158 = vand.u32 %v157, 4294901760
    %v159 = vsub.f32 %v157, %v158
    %v160 = vand.u32 %v159, 4294901760
    %161 = vmatpush1.msra.mxu0 %v160
    %162 = vmatprep.subr.mxu0 0.0
    %v163 = vand.u32 %v61, 4294901760
    %v164 = vsub.f32 %v61, %v163
    %v165 = vand.u32 %v164, 4294901760
    %v166 = vsub.f32 %v164, %v165
    %v167 = vand.u32 %v166, 4294901760
    %168 = vmatpush1.msra.mxu0 %v167
    %169 = vmatprep.subr.mxu0 0.0
    %v170 = vand.u32 %v62, 4294901760
    %v171 = vsub.f32 %v62, %v170
    %v172 = vand.u32 %v171, 4294901760
    %v173 = vsub.f32 %v171, %v172
    %v174 = vand.u32 %v173, 4294901760
    %175 = vmatpush1.msra.mxu0 %v174
    %176 = vmatprep.subr.mxu0 0.0
    %v177 = vand.u32 %v63, 4294901760
    %v178 = vsub.f32 %v63, %v177
    %v179 = vand.u32 %v178, 4294901760
    %v180 = vsub.f32 %v178, %v179
    %v181 = vand.u32 %v180, 4294901760
    %182 = vmatpush1.msra.mxu0 %v181
    %183 = vmatprep.subr.mxu0 0.0
    %v184 = vand.u32 %v64, 4294901760
    %v185 = vsub.f32 %v64, %v184
    %v186 = vand.u32 %v185, 4294901760
    %v187 = vsub.f32 %v185, %v186
    %v188 = vand.u32 %v187, 4294901760
    %189 = vmatpush1.msra.mxu0 %v188
    %190 = vmatprep.subr.mxu0 0.0
    %v191 = vand.u32 %v65, 4294901760
    %v192 = vsub.f32 %v65, %v191
    %v193 = vand.u32 %v192, 4294901760
    %v194 = vsub.f32 %v192, %v193
    %v195 = vand.u32 %v194, 4294901760
    %196 = vmatpush1.msra.mxu0 %v195
    %197 = vmatprep.subr.mxu0 0.0
    %v198 = vand.u32 %v66, 4294901760
    %v199 = vsub.f32 %v66, %v198
    %v200 = vand.u32 %v199, 4294901760
    %v201 = vsub.f32 %v199, %v200
    %v202 = vand.u32 %v201, 4294901760
    %203 = vmatpush1.msra.mxu0 %v202
    %204 = vmatprep.subr.mxu0 0.0
    %v205 = vand.u32 %v67, 4294901760
    %v206 = vsub.f32 %v67, %v205
    %v207 = vand.u32 %v206, 4294901760
    %v208 = vsub.f32 %v206, %v207
    %v209 = vand.u32 %v208, 4294901760
    %210 = vmatpush1.msra.mxu0 %v209
    %211 = vmatprep.subr.mxu0 0.0
    %212 = vmatpush1.msra.mxu0 0.0
    %213 = vmatprep.subr.mxu0 0.0
    %214 = vmatpush1.msra.mxu0 0.0
    %215 = vmatprep.subr.mxu0 0.0
    %216 = vmatpush1.msra.mxu0 0.0
    %217 = vmatprep.subr.mxu0 0.0
    %218 = vmatpush1.msra.mxu0 0.0
    %219 = vmatprep.subr.mxu0 0.0
    %220 = vmatpush1.msra.mxu0 0.0
    %221 = vmatprep.subr.mxu0 0.0
    %222 = vmatpush1.msra.mxu0 0.0
    %223 = vmatprep.subr.mxu0 0.0
    %224 = vmatpush1.msra.mxu0 0.0
    %225 = vmatprep.subr.mxu0 0.0
    %226 = vmatpush1.msra.mxu0 0.0
    %227 = vmatprep.subr.mxu0 0.0
    %228 = vmatpush1.msra.mxu0 0.0
    %229 = vmatprep.subr.mxu0 0.0
    %230 = vmatpush1.msra.mxu0 0.0
    %231 = vmatprep.subr.mxu0 0.0
    %232 = vmatpush1.msra.mxu0 0.0
    %233 = vmatprep.subr.mxu0 0.0
    %234 = vmatpush1.msra.mxu0 0.0
    %235 = vmatprep.subr.mxu0 0.0
    %236 = vmatpush1.msra.mxu0 0.0
    %237 = vmatprep.subr.mxu0 0.0
    %238 = vmatpush1.msra.mxu0 0.0
    %239 = vmatprep.subr.mxu0 0.0
    %240 = vmatpush1.msra.mxu0 0.0
    %241 = vmatprep.subr.mxu0 0.0
    %242 = vmatpush1.msra.mxu0 0.0
    %243 = vmatprep.subr.mxu0 0.0
    %244 = vmatpush1.msra.mxu0 0.0
    %245 = vmatprep.subr.mxu0 0.0
    %246 = vmatpush1.msra.mxu0 0.0
    %247 = vmatprep.subr.mxu0 0.0
    %248 = vmatpush1.msra.mxu0 0.0
    %249 = vmatprep.subr.mxu0 0.0
    %250 = vmatpush1.msra.mxu0 0.0
    %251 = vmatprep.subr.mxu0 0.0
    %252 = vmatpush1.msra.mxu0 0.0
    %253 = vmatprep.subr.mxu0 0.0
    %254 = vmatpush1.msra.mxu0 0.0
    %255 = vmatprep.subr.mxu0 0.0
    %256 = vmatpush1.msra.mxu0 0.0
    %257 = vmatprep.subr.mxu0 0.0
    %258 = vmatpush1.msra.mxu0 0.0
    %259 = vmatprep.mubr.f32.mxu0 0.0
    %v260 = vand.u32 %v70, 4294901760
    %261 = vmatmul.mubr.f32.gmra.mrb[0].mxu0 %v260
    %v262 = vpop.f32.mrb[0].mxu0
    %v263 = vadd.f32 %v152, %v262
    %v264 = vpop.f32.mrb[0].mxu0
    %265 = vdwg.mxu0
    %266 = vmatprep.subr.mxu0 0.0
    %v267 = vand.u32 %v60, 4294901760
    %v268 = vsub.f32 %v60, %v267
    %269 = vmatpush1.msra.mxu0 %v268
    %270 = vmatprep.subr.mxu0 0.0
    %v271 = vand.u32 %v61, 4294901760
    %v272 = vsub.f32 %v61, %v271
    %273 = vmatpush1.msra.mxu0 %v272
    %274 = vmatprep.subr.mxu0 0.0
    %v275 = vand.u32 %v62, 4294901760
    %v276 = vsub.f32 %v62, %v275
    %277 = vmatpush1.msra.mxu0 %v276
    %278 = vmatprep.subr.mxu0 0.0
    %v279 = vand.u32 %v63, 4294901760
    %v280 = vsub.f32 %v63, %v279
    %281 = vmatpush1.msra.mxu0 %v280
    %282 = vmatprep.subr.mxu0 0.0
    %v283 = vand.u32 %v64, 4294901760
    %v284 = vsub.f32 %v64, %v283
    %285 = vmatpush1.msra.mxu0 %v284
    %286 = vmatprep.subr.mxu0 0.0
    %v287 = vand.u32 %v65, 4294901760
    %v288 = vsub.f32 %v65, %v287
    %289 = vmatpush1.msra.mxu0 %v288
    %290 = vmatprep.subr.mxu0 0.0
    %v291 = vand.u32 %v66, 4294901760
    %v292 = vsub.f32 %v66, %v291
    %293 = vmatpush1.msra.mxu0 %v292
    %294 = vmatprep.subr.mxu0 0.0
    %v295 = vand.u32 %v67, 4294901760
    %v296 = vsub.f32 %v67, %v295
    %297 = vmatpush1.msra.mxu0 %v296
    %298 = vmatprep.subr.mxu0 0.0
    %299 = vmatpush1.msra.mxu0 0.0
    %300 = vmatprep.subr.mxu0 0.0
    %301 = vmatpush1.msra.mxu0 0.0
    %302 = vmatprep.subr.mxu0 0.0
    %303 = vmatpush1.msra.mxu0 0.0
    %304 = vmatprep.subr.mxu0 0.0
    %305 = vmatpush1.msra.mxu0 0.0
    %306 = vmatprep.subr.mxu0 0.0
    %307 = vmatpush1.msra.mxu0 0.0
    %308 = vmatprep.subr.mxu0 0.0
    %309 = vmatpush1.msra.mxu0 0.0
    %310 = vmatprep.subr.mxu0 0.0
    %311 = vmatpush1.msra.mxu0 0.0
    %312 = vmatprep.subr.mxu0 0.0
    %313 = vmatpush1.msra.mxu0 0.0
    %314 = vmatprep.subr.mxu0 0.0
    %315 = vmatpush1.msra.mxu0 0.0
    %316 = vmatprep.subr.mxu0 0.0
    %317 = vmatpush1.msra.mxu0 0.0
    %318 = vmatprep.subr.mxu0 0.0
    %319 = vmatpush1.msra.mxu0 0.0
    %320 = vmatprep.subr.mxu0 0.0
    %321 = vmatpush1.msra.mxu0 0.0
    %322 = vmatprep.subr.mxu0 0.0
    %323 = vmatpush1.msra.mxu0 0.0
    %324 = vmatprep.subr.mxu0 0.0
    %325 = vmatpush1.msra.mxu0 0.0
    %326 = vmatprep.subr.mxu0 0.0
    %327 = vmatpush1.msra.mxu0 0.0
    %328 = vmatprep.subr.mxu0 0.0
    %329 = vmatpush1.msra.mxu0 0.0
    %330 = vmatprep.subr.mxu0 0.0
    %331 = vmatpush1.msra.mxu0 0.0
    %332 = vmatprep.subr.mxu0 0.0
    %333 = vmatpush1.msra.mxu0 0.0
    %334 = vmatprep.subr.mxu0 0.0
    %335 = vmatpush1.msra.mxu0 0.0
    %336 = vmatprep.subr.mxu0 0.0
    %337 = vmatpush1.msra.mxu0 0.0
    %338 = vmatprep.subr.mxu0 0.0
    %339 = vmatpush1.msra.mxu0 0.0
    %340 = vmatprep.subr.mxu0 0.0
    %341 = vmatpush1.msra.mxu0 0.0
    %342 = vmatprep.subr.mxu0 0.0
    %343 = vmatpush1.msra.mxu0 0.0
    %344 = vmatprep.subr.mxu0 0.0
    %345 = vmatpush1.msra.mxu0 0.0
    %346 = vmatprep.mubr.f32.mxu0 0.0
    %v347 = vand.u32 %v70, 4294901760
    %v348 = vsub.f32 %v70, %v347
    %349 = vmatmul.mubr.f32.gmra.mrb[0].mxu0 %v348
    %v350 = vpop.f32.mrb[0].mxu0
    %v351 = vadd.f32 %v263, %v350
    %v352 = vpop.f32.mrb[0].mxu0
    %353 = vdwg.mxu0
    %354 = vmatprep.subr.mxu0 0.0
    %v355 = vand.u32 %v60, 4294901760
    %356 = vmatpush1.msra.mxu0 %v355
    %357 = vmatprep.subr.mxu0 0.0
    %v358 = vand.u32 %v61, 4294901760
    %359 = vmatpush1.msra.mxu0 %v358
    %360 = vmatprep.subr.mxu0 0.0
    %v361 = vand.u32 %v62, 4294901760
    %362 = vmatpush1.msra.mxu0 %v361
    %363 = vmatprep.subr.mxu0 0.0
    %v364 = vand.u32 %v63, 4294901760
    %365 = vmatpush1.msra.mxu0 %v364
    %366 = vmatprep.subr.mxu0 0.0
    %v367 = vand.u32 %v64, 4294901760
    %368 = vmatpush1.msra.mxu0 %v367
    %369 = vmatprep.subr.mxu0 0.0
    %v370 = vand.u32 %v65, 4294901760
    %371 = vmatpush1.msra.mxu0 %v370
    %372 = vmatprep.subr.mxu0 0.0
    %v373 = vand.u32 %v66, 4294901760
    %374 = vmatpush1.msra.mxu0 %v373
    %375 = vmatprep.subr.mxu0 0.0
    %v376 = vand.u32 %v67, 4294901760
    %377 = vmatpush1.msra.mxu0 %v376
    %378 = vmatprep.subr.mxu0 0.0
    %379 = vmatpush1.msra.mxu0 0.0
    %380 = vmatprep.subr.mxu0 0.0
    %381 = vmatpush1.msra.mxu0 0.0
    %382 = vmatprep.subr.mxu0 0.0
    %383 = vmatpush1.msra.mxu0 0.0
    %384 = vmatprep.subr.mxu0 0.0
    %385 = vmatpush1.msra.mxu0 0.0
    %386 = vmatprep.subr.mxu0 0.0
    %387 = vmatpush1.msra.mxu0 0.0
    %388 = vmatprep.subr.mxu0 0.0
    %389 = vmatpush1.msra.mxu0 0.0
    %390 = vmatprep.subr.mxu0 0.0
    %391 = vmatpush1.msra.mxu0 0.0
    %392 = vmatprep.subr.mxu0 0.0
    %393 = vmatpush1.msra.mxu0 0.0
    %394 = vmatprep.subr.mxu0 0.0
    %395 = vmatpush1.msra.mxu0 0.0
    %396 = vmatprep.subr.mxu0 0.0
    %397 = vmatpush1.msra.mxu0 0.0
    %398 = vmatprep.subr.mxu0 0.0
    %399 = vmatpush1.msra.mxu0 0.0
    %400 = vmatprep.subr.mxu0 0.0
    %401 = vmatpush1.msra.mxu0 0.0
    %402 = vmatprep.subr.mxu0 0.0
    %403 = vmatpush1.msra.mxu0 0.0
    %404 = vmatprep.subr.mxu0 0.0
    %405 = vmatpush1.msra.mxu0 0.0
    %406 = vmatprep.subr.mxu0 0.0
    %407 = vmatpush1.msra.mxu0 0.0
    %408 = vmatprep.subr.mxu0 0.0
    %409 = vmatpush1.msra.mxu0 0.0
    %410 = vmatprep.subr.mxu0 0.0
    %411 = vmatpush1.msra.mxu0 0.0
    %412 = vmatprep.subr.mxu0 0.0
    %413 = vmatpush1.msra.mxu0 0.0
    %414 = vmatprep.subr.mxu0 0.0
    %415 = vmatpush1.msra.mxu0 0.0
    %416 = vmatprep.subr.mxu0 0.0
    %417 = vmatpush1.msra.mxu0 0.0
    %418 = vmatprep.subr.mxu0 0.0
    %419 = vmatpush1.msra.mxu0 0.0
    %420 = vmatprep.subr.mxu0 0.0
    %421 = vmatpush1.msra.mxu0 0.0
    %422 = vmatprep.subr.mxu0 0.0
    %423 = vmatpush1.msra.mxu0 0.0
    %424 = vmatprep.subr.mxu0 0.0
    %425 = vmatpush1.msra.mxu0 0.0
    %426 = vmatprep.mubr.f32.mxu0 0.0
    %v427 = vand.u32 %v70, 4294901760
    %v428 = vsub.f32 %v70, %v427
    %v429 = vand.u32 %v428, 4294901760
    %430 = vmatmul.mubr.f32.gmra.mrb[0].mxu0 %v429
    %v431 = vpop.f32.mrb[0].mxu0
    %v432 = vadd.f32 %v351, %v431
    %v433 = vpop.f32.mrb[0].mxu0
    %434 = vdwg.mxu0
    %435 = vmatprep.subr.mxu0 0.0
    %v436 = vand.u32 %v60, 4294901760
    %v437 = vsub.f32 %v60, %v436
    %v438 = vand.u32 %v437, 4294901760
    %439 = vmatpush1.msra.mxu0 %v438
    %440 = vmatprep.subr.mxu0 0.0
    %v441 = vand.u32 %v61, 4294901760
    %v442 = vsub.f32 %v61, %v441
    %v443 = vand.u32 %v442, 4294901760
    %444 = vmatpush1.msra.mxu0 %v443
    %445 = vmatprep.subr.mxu0 0.0
    %v446 = vand.u32 %v62, 4294901760
    %v447 = vsub.f32 %v62, %v446
    %v448 = vand.u32 %v447, 4294901760
    %449 = vmatpush1.msra.mxu0 %v448
    %450 = vmatprep.subr.mxu0 0.0
    %v451 = vand.u32 %v63, 4294901760
    %v452 = vsub.f32 %v63, %v451
    %v453 = vand.u32 %v452, 4294901760
    %454 = vmatpush1.msra.mxu0 %v453
    %455 = vmatprep.subr.mxu0 0.0
    %v456 = vand.u32 %v64, 4294901760
    %v457 = vsub.f32 %v64, %v456
    %v458 = vand.u32 %v457, 4294901760
    %459 = vmatpush1.msra.mxu0 %v458
    %460 = vmatprep.subr.mxu0 0.0
    %v461 = vand.u32 %v65, 4294901760
    %v462 = vsub.f32 %v65, %v461
    %v463 = vand.u32 %v462, 4294901760
    %464 = vmatpush1.msra.mxu0 %v463
    %465 = vmatprep.subr.mxu0 0.0
    %v466 = vand.u32 %v66, 4294901760
    %v467 = vsub.f32 %v66, %v466
    %v468 = vand.u32 %v467, 4294901760
    %469 = vmatpush1.msra.mxu0 %v468
    %470 = vmatprep.subr.mxu0 0.0
    %v471 = vand.u32 %v67, 4294901760
    %v472 = vsub.f32 %v67, %v471
    %v473 = vand.u32 %v472, 4294901760
    %474 = vmatpush1.msra.mxu0 %v473
    %475 = vmatprep.subr.mxu0 0.0
    %476 = vmatpush1.msra.mxu0 0.0
    %477 = vmatprep.subr.mxu0 0.0
    %478 = vmatpush1.msra.mxu0 0.0
    %479 = vmatprep.subr.mxu0 0.0
    %480 = vmatpush1.msra.mxu0 0.0
    %481 = vmatprep.subr.mxu0 0.0
    %482 = vmatpush1.msra.mxu0 0.0
    %483 = vmatprep.subr.mxu0 0.0
    %484 = vmatpush1.msra.mxu0 0.0
    %485 = vmatprep.subr.mxu0 0.0
    %486 = vmatpush1.msra.mxu0 0.0
    %487 = vmatprep.subr.mxu0 0.0
    %488 = vmatpush1.msra.mxu0 0.0
    %489 = vmatprep.subr.mxu0 0.0
    %490 = vmatpush1.msra.mxu0 0.0
    %491 = vmatprep.subr.mxu0 0.0
    %492 = vmatpush1.msra.mxu0 0.0
    %493 = vmatprep.subr.mxu0 0.0
    %494 = vmatpush1.msra.mxu0 0.0
    %495 = vmatprep.subr.mxu0 0.0
    %496 = vmatpush1.msra.mxu0 0.0
    %497 = vmatprep.subr.mxu0 0.0
    %498 = vmatpush1.msra.mxu0 0.0
    %499 = vmatprep.subr.mxu0 0.0
    %500 = vmatpush1.msra.mxu0 0.0
    %501 = vmatprep.subr.mxu0 0.0
    %502 = vmatpush1.msra.mxu0 0.0
    %503 = vmatprep.subr.mxu0 0.0
    %504 = vmatpush1.msra.mxu0 0.0
    %505 = vmatprep.subr.mxu0 0.0
    %506 = vmatpush1.msra.mxu0 0.0
    %507 = vmatprep.subr.mxu0 0.0
    %508 = vmatpush1.msra.mxu0 0.0
    %509 = vmatprep.subr.mxu0 0.0
    %510 = vmatpush1.msra.mxu0 0.0
    %511 = vmatprep.subr.mxu0 0.0
    %512 = vmatpush1.msra.mxu0 0.0
    %513 = vmatprep.subr.mxu0 0.0
    %514 = vmatpush1.msra.mxu0 0.0
    %515 = vmatprep.subr.mxu0 0.0
    %516 = vmatpush1.msra.mxu0 0.0
    %517 = vmatprep.subr.mxu0 0.0
    %518 = vmatpush1.msra.mxu0 0.0
    %519 = vmatprep.subr.mxu0 0.0
    %520 = vmatpush1.msra.mxu0 0.0
    %521 = vmatprep.subr.mxu0 0.0
    %522 = vmatpush1.msra.mxu0 0.0
    %523 = vmatprep.mubr.f32.mxu0 0.0
    %v524 = vand.u32 %v70, 4294901760
    %525 = vmatmul.mubr.f32.gmra.mrb[0].mxu0 %v524
    %v526 = vpop.f32.mrb[0].mxu0
    %v527 = vadd.f32 %v432, %v526
    %v528 = vpop.f32.mrb[0].mxu0
    %529 = vdwg.mxu0
    %530 = vmatprep.subr.mxu0 0.0
    %v531 = vand.u32 %v60, 4294901760
    %532 = vmatpush1.msra.mxu0 %v531
    %533 = vmatprep.subr.mxu0 0.0
    %v534 = vand.u32 %v61, 4294901760
    %535 = vmatpush1.msra.mxu0 %v534
    %536 = vmatprep.subr.mxu0 0.0
    %v537 = vand.u32 %v62, 4294901760
    %538 = vmatpush1.msra.mxu0 %v537
    %539 = vmatprep.subr.mxu0 0.0
    %v540 = vand.u32 %v63, 4294901760
    %541 = vmatpush1.msra.mxu0 %v540
    %542 = vmatprep.subr.mxu0 0.0
    %v543 = vand.u32 %v64, 4294901760
    %544 = vmatpush1.msra.mxu0 %v543
    %545 = vmatprep.subr.mxu0 0.0
    %v546 = vand.u32 %v65, 4294901760
    %547 = vmatpush1.msra.mxu0 %v546
    %548 = vmatprep.subr.mxu0 0.0
    %v549 = vand.u32 %v66, 4294901760
    %550 = vmatpush1.msra.mxu0 %v549
    %551 = vmatprep.subr.mxu0 0.0
    %v552 = vand.u32 %v67, 4294901760
    %553 = vmatpush1.msra.mxu0 %v552
    %554 = vmatprep.subr.mxu0 0.0
    %555 = vmatpush1.msra.mxu0 0.0
    %556 = vmatprep.subr.mxu0 0.0
    %557 = vmatpush1.msra.mxu0 0.0
    %558 = vmatprep.subr.mxu0 0.0
    %559 = vmatpush1.msra.mxu0 0.0
    %560 = vmatprep.subr.mxu0 0.0
    %561 = vmatpush1.msra.mxu0 0.0
    %562 = vmatprep.subr.mxu0 0.0
    %563 = vmatpush1.msra.mxu0 0.0
    %564 = vmatprep.subr.mxu0 0.0
    %565 = vmatpush1.msra.mxu0 0.0
    %566 = vmatprep.subr.mxu0 0.0
    %567 = vmatpush1.msra.mxu0 0.0
    %568 = vmatprep.subr.mxu0 0.0
    %569 = vmatpush1.msra.mxu0 0.0
    %570 = vmatprep.subr.mxu0 0.0
    %571 = vmatpush1.msra.mxu0 0.0
    %572 = vmatprep.subr.mxu0 0.0
    %573 = vmatpush1.msra.mxu0 0.0
    %574 = vmatprep.subr.mxu0 0.0
    %575 = vmatpush1.msra.mxu0 0.0
    %576 = vmatprep.subr.mxu0 0.0
    %577 = vmatpush1.msra.mxu0 0.0
    %578 = vmatprep.subr.mxu0 0.0
    %579 = vmatpush1.msra.mxu0 0.0
    %580 = vmatprep.subr.mxu0 0.0
    %581 = vmatpush1.msra.mxu0 0.0
    %582 = vmatprep.subr.mxu0 0.0
    %583 = vmatpush1.msra.mxu0 0.0
    %584 = vmatprep.subr.mxu0 0.0
    %585 = vmatpush1.msra.mxu0 0.0
    %586 = vmatprep.subr.mxu0 0.0
    %587 = vmatpush1.msra.mxu0 0.0
    %588 = vmatprep.subr.mxu0 0.0
    %589 = vmatpush1.msra.mxu0 0.0
    %590 = vmatprep.subr.mxu0 0.0
    %591 = vmatpush1.msra.mxu0 0.0
    %592 = vmatprep.subr.mxu0 0.0
    %593 = vmatpush1.msra.mxu0 0.0
    %594 = vmatprep.subr.mxu0 0.0
    %595 = vmatpush1.msra.mxu0 0.0
    %596 = vmatprep.subr.mxu0 0.0
    %597 = vmatpush1.msra.mxu0 0.0
    %598 = vmatprep.subr.mxu0 0.0
    %599 = vmatpush1.msra.mxu0 0.0
    %600 = vmatprep.subr.mxu0 0.0
    %601 = vmatpush1.msra.mxu0 0.0
    %602 = vmatprep.mubr.f32.mxu0 0.0
    %v603 = vand.u32 %v70, 4294901760
    %604 = vmatmul.mubr.f32.gmra.mrb[0].mxu0 %v603
    %v605 = vpop.f32.mrb[0].mxu0
    %v606 = vadd.f32 %v527, %v605
    %v607 = vpop.f32.mrb[0].mxu0
    %608 = vdwg.mxu0
    %v609 = vld [vmem:[%s3] sm:$0x1]
    %v611 = vlaneseq
    %v612 = vshrl.u32 %v611, 7
    %v613 = vsub.s32 0, %v612
    %v614 = vrot.slane %v609, %v613
    %v616 = vadd.f32 %v606, %v614
    %vm617 = vcmask 80896
    %618 = vst.msk [vmem:[#allocation5] sm:$0xff] %vm617, %v616
    // Predicated region
    $region22: #{tpu_custom_call.1} parent=1 // pred_check
      _
    $region23: #{tpu_custom_call.1} parent=1 // pred_check_branch
      %620 = sbr.rel (0) target = $region25
    $region24: #{tpu_custom_call.1} parent=1 // pred_region
      %s622 = ssub.s32 128, 128
      %623 = vsyncadd [#allocation4], %s622
      %s625 = sshll.u32 [#allocation5], 4
      %s626 = int_to_ptr.vmem [resolvable:$true] %s625
      %628 = dma.vmem_to_hbm [thread:$0]  %s626, 128, %s4, [#allocation4]
    $region25: #{tpu_custom_call.1} parent=1 // pred_fallthru
      _
    // Predicated region
    $region26: #{tpu_custom_call.1} parent=1 // pred_check
      _
    $region27: #{tpu_custom_call.1} parent=1 // pred_check_branch
      %630 = sbr.rel (0) target = $region29
    $region28: #{tpu_custom_call.1} parent=1 // pred_region
      %631 = dma.done [#allocation4], 128
    $region29: #{tpu_custom_call.1} parent=1 // pred_fallthru
      _
    %632 = vsyncpa [#allocation3], 1
    %633 = vsyncpa [#allocation4], 1

</llo_original>
